<compile_context>
chip_gen: v7x
topology: tpu7x:2x2x1
jax: 0.10.0
libtpu: 0.0.40
codegen_flags: <defaults>
</compile_context>

<pallas_src>
import functools

import jax
import jax.numpy as jnp
from jax.experimental import pallas as pl
from jax.experimental.pallas import tpu as pltpu

OFFSET = 1.0          # matches DurationPredictorLoss(offset=1.0)
USE_MASKING = True    # matches default use_masking=True

_FAST_PATH_MAX_ELEMS = 512 * 1024          # single-invocation path threshold
_TARGET_BLOCK_BYTES = 2 * 1024 * 1024      # per-input per-step block target


def _round_up(x, m):
    return (x + m - 1) // m * m


def _round_down(x, m):
    return x // m * m


# --------------------------------------------------------------------------
# Fast path: whole problem in one kernel invocation (no grid, no scratch).
# --------------------------------------------------------------------------
def _dp_loss_small_kernel(d_ref, ds_ref, ilen_ref, sse_ref, *, offset,
                          use_masking):
    d = d_ref[...].astype(jnp.float32)        # (B, Tmax)
    ds = ds_ref[...].astype(jnp.float32)      # (B, Tmax)
    target = jnp.log(ds + jnp.float32(offset))          # EUP
    err = d - target                                      # VPU
    sq = err * err                                        # VPU
    if use_masking:
        pos = jax.lax.broadcasted_iota(jnp.int32, d.shape, 1)
        sq = jnp.where(pos < ilen_ref[...], sq, jnp.float32(0.0))
    sse_ref[0, 0] = jnp.sum(sq)


# --------------------------------------------------------------------------
# Tiled path: full-batch rows x large T tiles, T split into 2 parallel chunks.
# --------------------------------------------------------------------------
def _dp_loss_tiled_kernel(d_ref, ds_ref, ilen_ref, sse_ref, acc_ref, *,
                          tmax, tile_t, nt_per_chunk, offset, use_masking,
                          needs_bounds_guard):
    c = pl.program_id(0)          # parallel chunk of the T reduction
    t = pl.program_id(1)          # step within the chunk (reduction axis)

    @pl.when(t == 0)
    def _():
        acc_ref[...] = jnp.zeros_like(acc_ref)

    d = d_ref[...].astype(jnp.float32)        # (B, tile_t)
    ds = ds_ref[...].astype(jnp.float32)      # (B, tile_t)

    target = jnp.log(ds + jnp.float32(offset))           # EUP
    err = d - target                                       # VPU
    sq = err * err                                         # VPU

    # Logical (un-clamped) column of every element in this tile; any padded /
    # duplicated columns from the clamped index_map land at pos >= Tmax and
    # are zeroed by the mask below (ilens are pre-clamped to Tmax).
    col0 = (c * nt_per_chunk + t) * tile_t
    if use_masking:
        pos = jax.lax.broadcasted_iota(jnp.int32, d.shape, 1) + col0
        sq = jnp.where(pos < ilen_ref[...], sq, jnp.float32(0.0))
    elif needs_bounds_guard:
        pos = jax.lax.broadcasted_iota(jnp.int32, d.shape, 1) + col0
        sq = jnp.where(pos < tmax, sq, jnp.float32(0.0))

    # Lane-width-128 accumulator: fold the tile lane-wise, keep (B, 128).
    b_block = acc_ref.shape[0]
    acc_ref[...] += sq.reshape(b_block, tile_t // 128, 128).sum(axis=1)

    @pl.when(t == nt_per_chunk - 1)
    def _():
        # Single cross-lane reduce + scalar SMEM write per chunk.
        sse_ref[0, 0] = jnp.sum(acc_ref[...])


# --------------------------------------------------------------------------
# Wrapper
# --------------------------------------------------------------------------
def duration_predictor_loss(d_outs, ds, ilens, *, offset=OFFSET,
                            use_masking=USE_MASKING, tile_t=None,
                            force_tiled=False):
    """d_outs: (B, Tmax) float, ds: (B, Tmax), ilens: (B,) int -> scalar loss."""
    B, Tmax = d_outs.shape
    ilens_i32 = jnp.minimum(ilens.astype(jnp.int32), Tmax)   # clamp once here
    ilens_col = ilens_i32.reshape(B, 1)

    if use_masking:
        # Count of valid elements: tiny B-length reduce, done once here.
        # All-zero ilens -> count == 0 -> NaN, matching the degenerate
        # masked_select + MSELoss behavior in PyTorch.
        count = jnp.sum(ilens_i32).astype(jnp.float32)
    else:
        count = jnp.float32(B * Tmax)

    # ----- Fast path: one invocation, no grid / pipeline machinery. -----
    if (B * Tmax <= _FAST_PATH_MAX_ELEMS) and not force_tiled:
        kernel = functools.partial(_dp_loss_small_kernel, offset=float(offset),
                                   use_masking=use_masking)
        sse = pl.pallas_call(
            kernel,
            out_shape=jax.ShapeDtypeStruct((1, 1), jnp.float32),
            in_specs=[
                pl.BlockSpec(memory_space=pltpu.MemorySpace.VMEM),
                pl.BlockSpec(memory_space=pltpu.MemorySpace.VMEM),
                pl.BlockSpec(memory_space=pltpu.MemorySpace.VMEM),
            ],
            out_specs=pl.BlockSpec(memory_space=pltpu.MemorySpace.SMEM),
            compiler_params=pltpu.CompilerParams(
                vmem_limit_bytes=32 * 1024 * 1024),
        )(d_outs, ds, ilens_col)
        return (sse[0, 0] / count).astype(jnp.float32)

    # ----- Tiled path: full-batch rows, MiB-scale T tiles. -----
    d_bytes = jnp.dtype(d_outs.dtype).itemsize
    ds_bytes = jnp.dtype(ds.dtype).itemsize
    itemsize = max(d_bytes, ds_bytes)

    tile_t_cap = _round_up(Tmax, 128)
    if tile_t is None:
        tile_t = max(128, _round_down(_TARGET_BLOCK_BYTES // max(B * itemsize, 1),
                                      128))
    tile_t = max(128, _round_down(int(tile_t), 128))
    tile_t = min(tile_t, tile_t_cap)

    nt_total = pl.cdiv(Tmax, tile_t)
    n_chunks = 2 if nt_total >= 2 else 1      # 2-way 'parallel' split for v7x
    nt_per_chunk = pl.cdiv(nt_total, n_chunks)
    coverage = n_chunks * nt_per_chunk * tile_t
    needs_bounds_guard = coverage != Tmax

    def in_index_map(c, t):
        # Clamp so a short final chunk never requests a block past the array;
        # duplicated columns get pos >= Tmax and are masked out in the kernel.
        return (0, jnp.minimum(c * nt_per_chunk + t, nt_total - 1))

    # VMEM budget: 2 inputs x 2 pipeline buffers (native dtype) + f32
    # elementwise temporaries + lane-width accumulator + margin.
    block_bytes = B * tile_t * (d_bytes + ds_bytes)
    per_block_f32 = B * tile_t * 4
    vmem_limit = 2 * block_bytes + 6 * per_block_f32 + B * 128 * 4 + (2 << 20)
    vmem_limit = int(min(48 << 20, max(16 << 20, vmem_limit)))

    kernel = functools.partial(
        _dp_loss_tiled_kernel, tmax=Tmax, tile_t=tile_t,
        nt_per_chunk=nt_per_chunk, offset=float(offset),
        use_masking=use_masking, needs_bounds_guard=needs_bounds_guard)

    sse_parts = pl.pallas_call(
        kernel,
        out_shape=jax.ShapeDtypeStruct((n_chunks, 1), jnp.float32),
        grid_spec=pltpu.PrefetchScalarGridSpec(
            num_scalar_prefetch=0,
            grid=(n_chunks, nt_per_chunk),
            in_specs=[
                pl.BlockSpec((B, tile_t), in_index_map),
                pl.BlockSpec((B, tile_t), in_index_map),
                pl.BlockSpec((B, 1), lambda c, t: (0, 0)),
            ],
            out_specs=pl.BlockSpec((1, 1), lambda c, t: (c, 0),
                                   memory_space=pltpu.MemorySpace.SMEM),
            scratch_shapes=[pltpu.VMEM((B, 128), jnp.float32)],
        ),
        compiler_params=pltpu.CompilerParams(
            dimension_semantics=("parallel", "arbitrary"),
            vmem_limit_bytes=vmem_limit),
    )(d_outs, ds, ilens_col)      # native dtypes, no wrapper-side upcast

    sse = jnp.sum(sse_parts)
    return (sse / count).astype(jnp.float32)


# --------------------------------------------------------------------------
# Pure-JAX reference matching the PyTorch forward.
# --------------------------------------------------------------------------
def _reference(d_outs, ds, ilens, *, offset=OFFSET, use_masking=USE_MASKING):
    B, Tmax = d_outs.shape
    pos = jnp.arange(Tmax)[None, :]
    mask = pos < ilens.astype(jnp.int32)[:, None]
    target = jnp.log(ds.astype(jnp.float32) + offset)
    sq = (d_outs.astype(jnp.float32) - target) ** 2
    if use_masking:
        return jnp.sum(jnp.where(mask, sq, 0.0)) / jnp.sum(mask)
    return jnp.mean(sq)


if __name__ == "__main__":
    key = jax.random.PRNGKey(0)
    k1, k2, k3 = jax.random.split(key, 3)

    # ---- Small problem: exercises the single-invocation fast path. ----
    B, Tmax = 8, 256
    d_outs = jax.random.normal(k1, (B, Tmax), dtype=jnp.float32)
    ds = jax.random.randint(k2, (B, Tmax), 0, 10).astype(jnp.float32)
    ilens = jax.random.randint(k3, (B,), 1, Tmax + 1).astype(jnp.int32)

    loss = duration_predictor_loss(d_outs, ds, ilens)
    jax.block_until_ready(loss)
    ref = _reference(d_outs, ds, ilens)
    assert jnp.allclose(loss, ref, rtol=1e-5, atol=1e-5), (loss, ref)

    # ---- Tiled path (forced) with non-divisible Tmax: exercises the 2-way
    # parallel T split, index-map clamping and padded-column masking. ----
    Tmax2 = 300
    d2 = jax.random.normal(k1, (B, Tmax2), dtype=jnp.float32)
    ds2 = jax.random.randint(k2, (B, Tmax2), 0, 10).astype(jnp.float32)
    il2 = jax.random.randint(k3, (B,), 1, Tmax2 + 1).astype(jnp.int32)
    loss2 = duration_predictor_loss(d2, ds2, il2, force_tiled=True, tile_t=128)
    jax.block_until_ready(loss2)
    ref2 = _reference(d2, ds2, il2)
    assert jnp.allclose(loss2, ref2, rtol=1e-5, atol=1e-5), (loss2, ref2)

    print("KERNEL_OK")
</pallas_src>

<mosaic_0001>
module attributes {stable_mosaic.version = 11 : i64} {
  func.func @_dp_loss_small_kernel(%arg0: memref<8x256xf32, #tpu.memory_space<vmem>>, %arg1: memref<8x256xf32, #tpu.memory_space<vmem>>, %arg2: memref<8x1xi32, #tpu.memory_space<vmem>>, %arg3: memref<1x1xf32, #tpu.memory_space<smem>>) attributes {dimension_semantics = [], scalar_prefetch = 0 : i64, scratch_operands = 0 : i64, tpu.core_type = #tpu.core_type<tc>} {
    %c0 = arith.constant 0 : index
    %c0_0 = arith.constant 0 : index
    %0 = vector.load %arg0[%c0, %c0_0] : memref<8x256xf32, #tpu.memory_space<vmem>>, vector<8x256xf32>
    %c0_1 = arith.constant 0 : index
    %c0_2 = arith.constant 0 : index
    %1 = vector.load %arg1[%c0_1, %c0_2] : memref<8x256xf32, #tpu.memory_space<vmem>>, vector<8x256xf32>
    %cst = arith.constant 1.000000e+00 : f32
    %2 = vector.broadcast %cst : f32 to vector<8x256xf32>
    %3 = arith.addf %1, %2 : vector<8x256xf32>
    %4 = math.log %3 : vector<8x256xf32>
    %5 = arith.subf %0, %4 : vector<8x256xf32>
    %6 = arith.mulf %5, %5 : vector<8x256xf32>
    %7 = tpu.iota {dimensions = array<i32: 1>} : vector<8x256xi32>
    %c0_3 = arith.constant 0 : index
    %c0_4 = arith.constant 0 : index
    %8 = vector.load %arg2[%c0_3, %c0_4] : memref<8x1xi32, #tpu.memory_space<vmem>>, vector<8x1xi32>
    %9 = vector.broadcast %8 : vector<8x1xi32> to vector<8x256xi32>
    %10 = arith.cmpi slt, %7, %9 : vector<8x256xi32>
    %cst_5 = arith.constant 0.000000e+00 : f32
    %11 = vector.broadcast %cst_5 : f32 to vector<8x256xf32>
    %12 = arith.select %10, %6, %11 : vector<8x256xi1>, vector<8x256xf32>
    %13 = vector.shape_cast %12 : vector<8x256xf32> to vector<1x8x256xf32>
    %cst_6 = arith.constant dense<0.000000e+00> : vector<1xf32>
    %14 = vector.multi_reduction <add>, %13, %cst_6 [1, 2] : vector<1x8x256xf32> to vector<1xf32>
    %15 = vector.shape_cast %14 : vector<1xf32> to vector<1x1x1xf32>
    %16 = vector.extract %15[0, 0, 0] : f32 from vector<1x1x1xf32>
    %c0_7 = arith.constant 0 : index
    %c0_8 = arith.constant 0 : index
    %17 = memref.load %arg3[%c0_7, %c0_8] : memref<1x1xf32, #tpu.memory_space<smem>>
    memref.store %16, %arg3[%c0_7, %c0_8] : memref<1x1xf32, #tpu.memory_space<smem>>
    return
  }
}

</mosaic_0001>

<llo_original>
// kernel: tpu_custom_call.1
$region0: #{tpu_custom_call.1}
  #allocation0 [shape = 'u32[]', space=smem, size = 0x4, offset = 0x4, fixed_abs, tag = 'smem constant byte address 0x4 - core index']
  #allocation1 [shape = 'u32[144,128]{1,0:T(1,128)}', space=vmem, size = 0x12000, scoped, tag = 'internal scratch']
  %s0 = inlined_call_operand.hbm [shape: f32[8,256], index: 0, kind: input, shape index: {}]
  %s1 = inlined_call_operand.hbm [shape: f32[8,256], index: 1, kind: input, shape index: {}]
  %s2 = inlined_call_operand.vmem [shape: s32[8,1], index: 2, kind: input, shape index: {}]
  %s3 = inlined_call_operand.hbm [shape: f32[1,1], index: 3, kind: output, shape index: {}]
  %s4 = sld [smem:[#allocation0]]
  $region30: #{tpu_custom_call.1} parent=0
    _
  %s6 = ssub.s32 1, %s4
  %s7 = scalar_select 0, %s6, %s4
  $region1: #{tpu_custom_call.1} parent=0
    #allocation2 [shape = 'u8[8192]{0}', space=vmem, size = 0x2000, scoped, tag = 'input window, operand 0, single buffered']
    #allocation3 [shape = 's32[1]{0}', space=sflag, size = 0x4, scoped, tag = 'scoped memory for tpu_custom_call.1']
    #allocation4 [shape = 's32[1]{0}', space=sflag, size = 0x4, scoped, tag = 'scoped memory for tpu_custom_call.1']
    #allocation5 [shape = 'u8[8192]{0}', space=vmem, size = 0x2000, scoped, tag = 'input window, operand 1, single buffered']
    #allocation6 [shape = 's32[1]{0}', space=sflag, size = 0x4, scoped, tag = 'scoped memory for tpu_custom_call.1']
    #allocation7 [shape = 'u8[512]{0}', space=smem, size = 0x200, scoped, tag = 'output window, operand 0, single buffered']
    %8 = vsyncpa [#allocation3], 0
    %9 = vsyncpa [#allocation6], 0
    %10 = vsyncpa [#allocation4], 0
    // Predicated region
    $region2: #{tpu_custom_call.1} parent=1 // pred_check
      _
    $region3: #{tpu_custom_call.1} parent=1 // pred_check_branch
      %12 = sbr.rel (0) target = $region5
    $region4: #{tpu_custom_call.1} parent=1 // pred_region
      %s14 = ssub.s32 256, 256
      %15 = vsyncadd [#allocation3], %s14
      %s17 = sshll.u32 [#allocation2], 4
      %s18 = int_to_ptr.vmem [resolvable:$true] %s17
      %20 = dma.hbm_to_vmem [thread:$0]  %s0, 256, %s18, [#allocation3]
    $region5: #{tpu_custom_call.1} parent=1 // pred_fallthru
      _
    // Predicated region
    $region6: #{tpu_custom_call.1} parent=1 // pred_check
      _
    $region7: #{tpu_custom_call.1} parent=1 // pred_check_branch
      %22 = sbr.rel (0) target = $region9
    $region8: #{tpu_custom_call.1} parent=1 // pred_region
      %s24 = ssub.s32 256, 256
      %25 = vsyncadd [#allocation6], %s24
      %s27 = sshll.u32 [#allocation5], 4
      %s28 = int_to_ptr.vmem [resolvable:$true] %s27
      %30 = dma.hbm_to_vmem [thread:$0]  %s1, 256, %s28, [#allocation6]
    $region9: #{tpu_custom_call.1} parent=1 // pred_fallthru
      _
    // Predicated region
    $region10: #{tpu_custom_call.1} parent=1 // pred_check
      _
    $region11: #{tpu_custom_call.1} parent=1 // pred_check_branch
      %32 = sbr.rel (0) target = $region13
    $region12: #{tpu_custom_call.1} parent=1 // pred_region
      _
    $region13: #{tpu_custom_call.1} parent=1 // pred_fallthru
      _
    // Predicated region
    $region14: #{tpu_custom_call.1} parent=1 // pred_check
      _
    $region15: #{tpu_custom_call.1} parent=1 // pred_check_branch
      %34 = sbr.rel (0) target = $region17
    $region16: #{tpu_custom_call.1} parent=1 // pred_region
      %35 = dma.done [#allocation3], 256
    $region17: #{tpu_custom_call.1} parent=1 // pred_fallthru
      _
    // Predicated region
    $region18: #{tpu_custom_call.1} parent=1 // pred_check
      _
    $region19: #{tpu_custom_call.1} parent=1 // pred_check_branch
      %37 = sbr.rel (0) target = $region21
    $region20: #{tpu_custom_call.1} parent=1 // pred_region
      %38 = dma.done [#allocation6], 256
    $region21: #{tpu_custom_call.1} parent=1 // pred_fallthru
      _
    %v39 = vld [vmem:[#allocation2] sm:$0xff]
    %v40 = vld [vmem:[#allocation2 + $0x8] sm:$0xff]
    %v41 = vld [vmem:[#allocation5] sm:$0xff]
    %v42 = vld [vmem:[#allocation5 + $0x8] sm:$0xff]
    %v43 = vadd.f32 %v41, 1.0
    %v44 = vadd.f32 %v42, 1.0
    %v45 = vlog2.pop %v43
    %v46 = vmul.f32 %v45, 0.6931472
    %v47 = vlog2.pop %v44
    %v48 = vmul.f32 %v47, 0.6931472
    %v49 = vsub.f32 %v39, %v46
    %v50 = vsub.f32 %v40, %v48
    %v51 = vmul.f32 %v49, %v49
    %v52 = vmul.f32 %v50, %v50
    %v53 = vlaneseq
    %v54 = vand.u32 %v53, 127
    %v55 = vadd.s32 %v54, 128
    %v56 = vld [vmem:[%s2] sm:$0xff]
    %57 = vset.pattern.permute.xlu0 0
    %58 = vperm.xlu0 %57, %v56
    %v59 = vpop.permute.xlu0 %58
    %vm60 = vcmp.lt.s32.totalorder %v54, %v59
    %vm61 = vcmp.lt.s32.totalorder %v55, %v59
    %v62 = vsel %vm60, %v51, 0.0
    %v63 = vsel %vm61, %v52, 0.0
    %v64 = vadd.f32 %v62, %v63
    %65 = vadd.xlane.f32.xlu0 %v64
    %v66 = vpop.xlane.xlu0 %65
    %v67 = vrot.slane %v66, 4
    %v68 = vadd.f32 %v66, %v67
    %v69 = vrot.slane %v68, 2
    %v70 = vadd.f32 %v68, %v69
    %v71 = vrot.slane %v70, 1
    %v72 = vadd.f32 %v70, %v71
    %s73 = vtos %v72
    %s74 = scalar_lea.smem [#allocation7], 0
    %75 = sst [smem:[%s74]] %s73
    // Predicated region
    $region22: #{tpu_custom_call.1} parent=1 // pred_check
      _
    $region23: #{tpu_custom_call.1} parent=1 // pred_check_branch
      %77 = sbr.rel (0) target = $region25
    $region24: #{tpu_custom_call.1} parent=1 // pred_region
      %s79 = ssub.s32 16, 16
      %80 = vsyncadd [#allocation4], %s79
      %83 = dma.smem_to_hbm [#allocation7], 16, %s3, [#allocation4]
    $region25: #{tpu_custom_call.1} parent=1 // pred_fallthru
      _
    // Predicated region
    $region26: #{tpu_custom_call.1} parent=1 // pred_check
      _
    $region27: #{tpu_custom_call.1} parent=1 // pred_check_branch
      %85 = sbr.rel (0) target = $region29
    $region28: #{tpu_custom_call.1} parent=1 // pred_region
      %86 = dma.done [#allocation4], 16
    $region29: #{tpu_custom_call.1} parent=1 // pred_fallthru
      _
    %87 = sfence
    %88 = vsyncpa [#allocation3], 1
    %89 = vsyncpa [#allocation6], 1
    %90 = vsyncpa [#allocation4], 1

</llo_original>
